<compile_context>
chip_gen: v7x
topology: tpu7x:2x2x1
jax: 0.10.0
libtpu: 0.0.40
codegen_flags: <defaults>
</compile_context>

<pallas_src>
import jax
import jax.numpy as jnp
from jax import lax
from jax.experimental import pallas as pl
from jax.experimental.pallas import tpu as pltpu


_F32_CHUNK_BYTES = 512 * 1024  # per-chunk f32 working set inside the kernel


def _chip_params():
    """(tile_bytes, vmem_limit_bytes, two_tensorcores) per TPU generation."""
    kind = ""
    try:
        kind = jax.devices()[0].device_kind.lower()
    except Exception:
        pass
    if "v7" in kind:
        # 64 MiB physical VMEM, ~3.2 TB/s HBM: big tiles, explicit headroom.
        return 10 << 20, 48 << 20, True
    if "v6" in kind:
        # 128 MiB physical VMEM: 2 x 8 MiB double-buffered input fits easily.
        return 8 << 20, 40 << 20, False
    if "v5" in kind:
        # 16 MiB scoped default: keep the double-buffered input well under it.
        return 4 << 20, 14 << 20, False
    return 4 << 20, 32 << 20, False


def _choose_layout(n_elems, wd, itemsize, tile_budget):
    """Pick a free (contiguous) reshape (R, C) with a lane-dense last dim."""
    for cand in (1024, 512, 256, 128):
        if n_elems % cand == 0:
            return n_elems // cand, cand
    # Lane-sparse fallback: keep the native width as lane dim, but cap it so a
    # single 8-row group still fits comfortably in the per-step tile budget.
    C = wd
    limit = max(1, (tile_budget // 2) // (8 * itemsize))
    if C > limit:
        best, d = 1, 1
        while d * d <= C:
            if C % d == 0:
                if d <= limit:
                    best = max(best, d)
                if (C // d) <= limit:
                    best = max(best, C // d)
            d += 1
        C = best
    return n_elems // C, C


def _make_kernel(*, R, C, TR, ch, step, n_inner, n_steps, needs_mask):
    ragged_block = (TR % 8) != 0            # only for tiny inputs (TR == R < sublane step)
    n_full = 0 if ragged_block else TR // ch
    rem = 0 if ragged_block else TR - n_full * ch
    valid_last = R - (n_steps - 1) * TR     # real rows in the final block

    def _frac_dist(x):
        # |x - round(x)| == distance to nearest integer (ties -> 0.5 either way).
        x = x.astype(jnp.float32)
        f = x - jnp.floor(x)
        return jnp.minimum(f, 1.0 - f)

    def _chunk(x_ref, row0, rows, valid_rows):
        y = _frac_dist(x_ref[pl.ds(row0, rows), :])
        if valid_rows is not None:
            rid = lax.broadcasted_iota(jnp.int32, (rows, C), 0) + row0
            y = jnp.where(rid < valid_rows, y, 0.0)
        # Pure-VPU sublane group-sum into an (8, C) partial.
        return y.reshape(rows // 8, 8, C).sum(axis=0)

    def _accumulate(x_ref, o_ref, valid_rows):
        if ragged_block:
            # Tiny-input path: one small block, single cross-sublane reduce.
            y = _frac_dist(x_ref[...])
            if valid_rows is not None:
                rid = lax.broadcasted_iota(jnp.int32, (TR, C), 0)
                y = jnp.where(rid < valid_rows, y, 0.0)
            o_ref[0:1, :] = o_ref[0:1, :] + jnp.sum(y, axis=0, keepdims=True)
            return
        acc = jnp.zeros((8, C), jnp.float32)
        if n_full == 1:
            acc = acc + _chunk(x_ref, 0, ch, valid_rows)
        elif n_full > 1:
            def body(g, a):
                row0 = pl.multiple_of(g * ch, step)
                return a + _chunk(x_ref, row0, ch, valid_rows)
            acc = lax.fori_loop(0, n_full, body, acc)
        if rem > 0:
            acc = acc + _chunk(x_ref, n_full * ch, rem, valid_rows)
        o_ref[...] += acc

    def kernel(x_ref, o_ref):
        o = pl.program_id(0)
        i = pl.program_id(1)

        @pl.when(i == 0)
        def _():
            o_ref[...] = jnp.zeros_like(o_ref)

        if not needs_mask:
            _accumulate(x_ref, o_ref, None)
        else:
            gstep = o * n_inner + i

            @pl.when(gstep < n_steps - 1)
            def _():
                _accumulate(x_ref, o_ref, None)

            @pl.when(gstep == n_steps - 1)
            def _():
                _accumulate(x_ref, o_ref,
                            valid_last if valid_last < TR else None)
            # gstep > n_steps - 1 (megacore overshoot): contributes nothing;
            # the accumulator was zeroed at i == 0 and the wrapper sum is exact.

    return kernel


def quantity_loss(preds: jax.Array) -> jax.Array:
    """Pallas TPU equivalent of QuantityLoss.forward: mean(|preds - round(preds)|)."""
    assert preds.ndim == 4 and preds.shape[1] == 1
    n_elems = preds.size
    itemsize = jnp.dtype(preds.dtype).itemsize
    tile_budget, vmem_limit, two_cores = _chip_params()

    # Sublane granularity for the (native) input dtype.
    step = {4: 8, 2: 16, 1: 32}.get(itemsize, 8)

    R, C = _choose_layout(n_elems, preds.shape[3], itemsize, tile_budget)
    x2 = preds.reshape(R, C)  # contiguous reshape: free, no HBM copy

    if R < step:
        TR = R                                   # full-extent (possibly ragged) block
    else:
        budget_rows = max(step, (tile_budget // (C * itemsize)) // step * step)
        TR = min((R // step) * step, budget_rows)

    # In-kernel chunk rows: bounds f32 intermediates to ~_F32_CHUNK_BYTES so big
    # DMA blocks don't become big VMEM temporaries.
    ch = max(step, (_F32_CHUNK_BYTES // (C * 4)) // step * step)

    n_steps = pl.cdiv(R, TR)
    n_outer = 2 if (two_cores and n_steps >= 2) else 1
    n_inner = pl.cdiv(n_steps, n_outer)
    needs_mask = (n_outer * n_inner * TR) != R

    kernel = _make_kernel(R=R, C=C, TR=TR, ch=ch, step=step,
                          n_inner=n_inner, n_steps=n_steps,
                          needs_mask=needs_mask)

    tile_bytes = TR * C * itemsize
    vmem_limit = int(max(vmem_limit, 2 * tile_bytes + (4 << 20)))

    partial = pl.pallas_call(
        kernel,
        out_shape=jax.ShapeDtypeStruct((n_outer, 8, C), jnp.float32),
        grid_spec=pltpu.PrefetchScalarGridSpec(
            num_scalar_prefetch=0,
            grid=(n_outer, n_inner),
            in_specs=[pl.BlockSpec(
                (TR, C),
                # Clamp so overshoot steps of the megacore split / ragged tail
                # never issue an out-of-bounds DMA (their data is masked).
                lambda o, i: (jnp.minimum(o * n_inner + i, n_steps - 1), 0))],
            out_specs=pl.BlockSpec((None, 8, C), lambda o, i: (o, 0, 0)),
        ),
        compiler_params=pltpu.CompilerParams(
            dimension_semantics=("parallel", "arbitrary"),
            vmem_limit_bytes=vmem_limit),
        cost_estimate=pl.CostEstimate(
            flops=5 * n_elems,
            transcendentals=0,
            bytes_accessed=n_elems * itemsize + n_outer * 8 * C * 4),
    )(x2)

    # Tiny final cross-lane reduce (n_outer * 8 * C f32 partials) + mean.
    return (jnp.sum(partial) / jnp.float32(n_elems)).astype(jnp.float32)


if __name__ == "__main__":
    key = jax.random.PRNGKey(0)
    bs, c, ht, wd = 2, 1, 16, 16
    # instance map after relu -> non-negative values
    preds = jax.nn.relu(
        jax.random.normal(key, (bs, c, ht, wd), dtype=jnp.float32) * 3.0
    )

    out = jax.block_until_ready(quantity_loss(preds))

    # reference check in plain JAX
    ref = jnp.mean(jnp.abs(preds - jnp.round(preds)))
    assert jnp.allclose(out, ref, atol=1e-6, rtol=1e-6), (out, ref)

    print("KERNEL_OK")
</pallas_src>

<mosaic_0001>
module attributes {stable_mosaic.version = 11 : i64} {
  func.func @kernel(%arg0: i32, %arg1: i32, %arg2: memref<1x512xf32, #tpu.memory_space<vmem>>, %arg3: memref<1x8x512xf32, #tpu.memory_space<vmem>>) attributes {dimension_semantics = [#tpu.dimension_semantics<parallel>, #tpu.dimension_semantics<arbitrary>], iteration_bounds = array<i64: 1, 1>, scalar_prefetch = 0 : i64, scratch_operands = 0 : i64, tpu.core_type = #tpu.core_type<tc>, window_params = [{transform_indices = @transform_0, window_bounds = array<i64: 1, 512>}, {transform_indices = @transform_1, window_bounds = array<i64: 1, 8, 512>}]} {
    %c0_i32 = arith.constant 0 : i32
    %0 = arith.cmpi eq, %arg1, %c0_i32 : i32
    %1 = arith.extui %0 : i1 to i32
    %c0_i32_0 = arith.constant 0 : i32
    %2 = arith.cmpi ne, %1, %c0_i32_0 : i32
    scf.if %2 {
      %cst_9 = arith.constant 0.000000e+00 : f32
      %17 = vector.broadcast %cst_9 : f32 to vector<8x512xf32>
      %c0_10 = arith.constant 0 : index
      %c0_11 = arith.constant 0 : index
      %c0_12 = arith.constant 0 : index
      %18 = vector.load %arg3[%c0_10, %c0_11, %c0_12] : memref<1x8x512xf32, #tpu.memory_space<vmem>>, vector<1x8x512xf32>
      %19 = vector.shape_cast %18 : vector<1x8x512xf32> to vector<8x512xf32>
      %20 = vector.shape_cast %17 : vector<8x512xf32> to vector<1x8x512xf32>
      tpu.vector_store %arg3[%c0_10, %c0_11, %c0_12], %20 {strides = array<i32>} : memref<1x8x512xf32, #tpu.memory_space<vmem>>, vector<1x8x512xf32>,
    } else {
    }
    %c0 = arith.constant 0 : index
    %c0_1 = arith.constant 0 : index
    %3 = vector.load %arg2[%c0, %c0_1] : memref<1x512xf32, #tpu.memory_space<vmem>>, vector<1x512xf32>
    %4 = math.floor %3 : vector<1x512xf32>
    %5 = arith.subf %3, %4 : vector<1x512xf32>
    %cst = arith.constant 1.000000e+00 : f32
    %6 = vector.broadcast %cst : f32 to vector<1x512xf32>
    %7 = arith.subf %6, %5 : vector<1x512xf32>
    %8 = arith.minimumf %5, %7 : vector<1x512xf32>
    %c0_2 = arith.constant 0 : index
    %c0_3 = arith.constant 0 : index
    %c0_4 = arith.constant 0 : index
    %9 = vector.load %arg3[%c0_2, %c0_3, %c0_4] : memref<1x8x512xf32, #tpu.memory_space<vmem>>, vector<1x1x512xf32>
    %10 = vector.shape_cast %9 : vector<1x1x512xf32> to vector<1x512xf32>
    %cst_5 = arith.constant dense<0.000000e+00> : vector<512xf32>
    %11 = vector.multi_reduction <add>, %8, %cst_5 [0] : vector<1x512xf32> to vector<512xf32>
    %12 = vector.shape_cast %11 : vector<512xf32> to vector<1x512xf32>
    %13 = arith.addf %10, %12 : vector<1x512xf32>
    %c0_6 = arith.constant 0 : index
    %c0_7 = arith.constant 0 : index
    %c0_8 = arith.constant 0 : index
    %14 = vector.load %arg3[%c0_6, %c0_7, %c0_8] : memref<1x8x512xf32, #tpu.memory_space<vmem>>, vector<1x1x512xf32>
    %15 = vector.shape_cast %14 : vector<1x1x512xf32> to vector<1x512xf32>
    %16 = vector.shape_cast %13 : vector<1x512xf32> to vector<1x1x512xf32>
    tpu.vector_store %arg3[%c0_6, %c0_7, %c0_8], %16 {strides = array<i32>} : memref<1x8x512xf32, #tpu.memory_space<vmem>>, vector<1x1x512xf32>,
    return
  }
  func.func @transform_0(%arg0: i32, %arg1: i32) -> (i32, i32) {
    %c1_i32 = arith.constant 1 : i32
    %0 = arith.muli %arg0, %c1_i32 : i32
    %1 = arith.addi %0, %arg1 : i32
    %c0_i32 = arith.constant 0 : i32
    %2 = arith.minsi %1, %c0_i32 : i32
    %c0_i32_0 = arith.constant 0 : i32
    %c0_i32_1 = arith.constant 0 : i32
    return %2, %c0_i32_0 : i32, i32
  }
  func.func @transform_1(%arg0: i32, %arg1: i32) -> (i32, i32, i32) {
    %c0_i32 = arith.constant 0 : i32
    %c0_i32_0 = arith.constant 0 : i32
    %c0_i32_1 = arith.constant 0 : i32
    return %arg0, %c0_i32, %c0_i32_0 : i32, i32, i32
  }
}

</mosaic_0001>

<llo_original>
// kernel: tpu_custom_call.1
$region0: #{tpu_custom_call.1}
  #allocation0 [shape = 'u32[]', space=smem, size = 0x4, offset = 0x4, fixed_abs, tag = 'smem constant byte address 0x4 - core index']
  #allocation1 [shape = 'u32[144,128]{1,0:T(1,128)}', space=vmem, size = 0x12000, scoped, tag = 'internal scratch']
  %s0 = inlined_call_operand.hbm [shape: f32[1,512], index: 0, kind: input, shape index: {}]
  %s1 = inlined_call_operand.hbm [shape: f32[1,8,512], index: 1, kind: output, shape index: {}]
  %s2 = sld [smem:[#allocation0]]
  $region22: #{tpu_custom_call.1} parent=0
    _
  %s4 = ssub.s32 1, %s2
  %s5 = scalar_select 0, %s4, %s2
  $region1: #{tpu_custom_call.1} parent=0
    #allocation2 [shape = 'u8[2048]{0}', space=vmem, size = 0x800, scoped, tag = 'input window, operand 0, single buffered']
    #allocation3 [shape = 's32[1]{0}', space=sflag, size = 0x4, scoped, tag = 'scoped memory for tpu_custom_call.1']
    #allocation4 [shape = 's32[1]{0}', space=sflag, size = 0x4, scoped, tag = 'scoped memory for tpu_custom_call.1']
    #allocation5 [shape = 'u8[16384]{0}', space=vmem, size = 0x4000, scoped, tag = 'output window, operand 0, single buffered']
    %6 = vsyncpa [#allocation3], 0
    %7 = vsyncpa [#allocation4], 0
    // Predicated region
    $region2: #{tpu_custom_call.1} parent=1 // pred_check
      _
    $region3: #{tpu_custom_call.1} parent=1 // pred_check_branch
      %9 = sbr.rel (0) target = $region5
    $region4: #{tpu_custom_call.1} parent=1 // pred_region
      %s10 = sadd.s32 0, 0
      %p11 = scmp.lt.s32.totalorder %s10, 0
      %s12 = scalar_select %p11, %s10, 0
      %s14 = ssub.s32 64, 64
      %15 = vsyncadd [#allocation3], %s14
      %s16 = smul.addr %s12, 4
      %s17 = smul.addr %s16, 16
      %s18 = scalar_lea.hbm %s0, %s17
      %s20 = sshll.u32 [#allocation2], 4
      %s21 = int_to_ptr.vmem [resolvable:$true] %s20
      %23 = dma.hbm_to_vmem [thread:$0]  %s18, 64, %s21, [#allocation3]
    $region5: #{tpu_custom_call.1} parent=1 // pred_fallthru
      _
    // Predicated region
    $region6: #{tpu_custom_call.1} parent=1 // pred_check
      _
    $region7: #{tpu_custom_call.1} parent=1 // pred_check_branch
      %25 = sbr.rel (0) target = $region9
    $region8: #{tpu_custom_call.1} parent=1 // pred_region
      %26 = dma.done [#allocation3], 64
    $region9: #{tpu_custom_call.1} parent=1 // pred_fallthru
      _
    %s27 = sadd.s32 0, 0
    %p28 = scmp.lt.s32.totalorder %s27, 0
    %s29 = scalar_select %p28, %s27, 0
    %p30 = scmp.eq.s32.totalorder 0, 0
    // Predicated region
    $region10: #{tpu_custom_call.1} parent=1 // pred_check
      %p31 = pneg %p30
    $region11: #{tpu_custom_call.1} parent=1 // pred_check_branch
      %33 = sbr.rel (%p31) target = $region13
    $region12: #{tpu_custom_call.1} parent=1 // pred_region
      %34 = vst [vmem:[#allocation5] sm:$0xff] 0.0
      %35 = vst [vmem:[#allocation5 + $0x8] sm:$0xff] 0.0
      %36 = vst [vmem:[#allocation5 + $0x10] sm:$0xff] 0.0
      %37 = vst [vmem:[#allocation5 + $0x18] sm:$0xff] 0.0
    $region13: #{tpu_custom_call.1} parent=1 // pred_fallthru
      _
    %v38 = vld [vmem:[#allocation2] sm:$0xf]
    %v39 = vfloor.f32 %v38
    %v40 = vsub.f32 %v38, %v39
    %v41 = vsub.f32 1.0, %v40
    %v42 = vmin.f32 %v40, %v41
    %v43 = vld [vmem:[#allocation5] ss:$8 sm:$0xf]
    %v44 = vadd.f32 %v42, 0.0
    %v45 = vadd.f32 %v43, %v44
    %v46 = vlaneseq
    %vm47 = vcmp.ge.s32.totalorder %v46, 0
    %vm48 = vcmp.lt.s32.totalorder %v46, 512
    %vm49 = vmand %vm47, %vm48
    %50 = vst.msk [vmem:[#allocation5] ss:$8 sm:$0xf] %vm49, %v45
    %51 = vst.msk [vmem:[#allocation5] ss:$8 sm:$0x0] %vm49, %v45
    // Predicated region
    $region14: #{tpu_custom_call.1} parent=1 // pred_check
      _
    $region15: #{tpu_custom_call.1} parent=1 // pred_check_branch
      %53 = sbr.rel (0) target = $region17
    $region16: #{tpu_custom_call.1} parent=1 // pred_region
      %s55 = ssub.s32 512, 512
      %56 = vsyncadd [#allocation4], %s55
      %s58 = sshll.u32 [#allocation5], 4
      %s59 = int_to_ptr.vmem [resolvable:$true] %s58
      %61 = dma.vmem_to_hbm [thread:$0]  %s59, 512, %s1, [#allocation4]
    $region17: #{tpu_custom_call.1} parent=1 // pred_fallthru
      _
    // Predicated region
    $region18: #{tpu_custom_call.1} parent=1 // pred_check
      _
    $region19: #{tpu_custom_call.1} parent=1 // pred_check_branch
      %63 = sbr.rel (0) target = $region21
    $region20: #{tpu_custom_call.1} parent=1 // pred_region
      %64 = dma.done [#allocation4], 512
    $region21: #{tpu_custom_call.1} parent=1 // pred_fallthru
      _
    %65 = vsyncpa [#allocation3], 1
    %66 = vsyncpa [#allocation4], 1

</llo_original>
